<compile_context>
chip_gen: v7x
topology: tpu7x:2x2x1
jax: 0.10.0
libtpu: 0.0.40
codegen_flags: <defaults>
</compile_context>

<pallas_src>
import jax
import jax.numpy as jnp
from jax.experimental import pallas as pl
from jax.experimental.pallas import tpu as pltpu

_TARGET_BLOCK_BYTES = 4 * 1024 * 1024   # ~4 MiB per buffer (good on v5e/v6e/v7x)
_VMEM_LIMIT_BYTES = 48 * 1024 * 1024    # 2 in + 2 out buffers << 48 MiB (safe on v7x 64 MiB)


def _swish_kernel(x_ref, o_ref):
    # Uniform f32 compute: kernel is HBM-bound, so dtype of the math is free,
    # and f32 is strictly more accurate (and native on v5e's VPU/EUP).
    xf = x_ref[...].astype(jnp.float32)
    # sigmoid(x) = 0.5 * (tanh(x/2) + 1): one EUP transcendental + two cheap
    # VPU ops, no divide -> compute stays hidden under the DMA.
    sig = 0.5 * (jnp.tanh(0.5 * xf) + 1.0)
    o_ref[...] = (xf * sig).astype(o_ref.dtype)


def _packed_sublanes(dtype) -> int:
    # 8 for 4-byte dtypes, 16 for 2-byte (bf16), 32 for 1-byte.
    itemsize = jnp.dtype(dtype).itemsize
    return max(8, 32 // max(1, itemsize))


def _round_up(v: int, m: int) -> int:
    return ((v + m - 1) // m) * m


def _swish_ref(x):
    return x * jax.nn.sigmoid(x)


def _swish_flat_aligned(x_flat: jax.Array) -> jax.Array:
    """Swish on a flat array whose length is a multiple of 128 (copy-free reshape)."""
    n = x_flat.size
    dtype = x_flat.dtype
    itemsize = jnp.dtype(dtype).itemsize
    sub = _packed_sublanes(dtype)

    # Widest lane-dense last dim that reshapes copy-free (unmasked vst,
    # longer contiguous DMAs).
    lane = 128
    for cand in (1024, 512, 256):
        if n % cand == 0:
            lane = cand
            break
    rows = n // lane

    # Block: ~4 MiB per buffer, tile_rows a multiple of the packed sublane
    # count. No exact-divisor requirement: the grid uses cdiv and the final
    # (possibly partial) block is masked by Pallas.
    block_elems = max(sub * lane, _TARGET_BLOCK_BYTES // itemsize)
    if rows < sub:
        tile_rows = rows  # block equals full array dim -> valid block shape
    else:
        tile_rows = min(max(sub, (block_elems // lane // sub) * sub),
                        max(sub, (rows // sub) * sub))

    grid_n = pl.cdiv(rows, tile_rows)
    # v7x megacore: give mid-size tensors >=2 grid steps so the "parallel"
    # axis can shard across both TensorCores.
    if grid_n == 1 and rows >= 2 * sub:
        tile_rows = _round_up(pl.cdiv(rows, 2), sub)
        grid_n = pl.cdiv(rows, tile_rows)

    x2d = x_flat.reshape(rows, lane)
    out2d = pl.pallas_call(
        _swish_kernel,
        out_shape=jax.ShapeDtypeStruct((rows, lane), dtype),
        grid=(grid_n,),
        in_specs=[pl.BlockSpec((tile_rows, lane), lambda i: (i, 0))],
        out_specs=pl.BlockSpec((tile_rows, lane), lambda i: (i, 0)),
        compiler_params=pltpu.CompilerParams(
            dimension_semantics=("parallel",),
            vmem_limit_bytes=_VMEM_LIMIT_BYTES,
        ),
        cost_estimate=pl.CostEstimate(
            flops=5 * n,
            transcendentals=n,
            bytes_accessed=2 * n * itemsize,
        ),
    )(x2d)
    return out2d.reshape(-1)


def swish(x: jax.Array) -> jax.Array:
    """Elementwise swish: x * sigmoid(x). Any shape, any float dtype."""
    orig_shape = x.shape
    n = x.size
    if n == 0:
        return x

    if n % 128 == 0:
        # Fast path: copy-free reshape, exactly one HBM read + one write.
        return _swish_flat_aligned(x.reshape(-1)).reshape(orig_shape)

    # Ragged path: kernel on the 128-aligned bulk, finish the <128-element
    # tail in plain XLA (no whole-tensor pad / post-slice round trips).
    x_flat = x.reshape(-1)
    n_bulk = (n // 128) * 128
    if n_bulk == 0:
        # Tiny tensor (< 128 elements): not worth a kernel launch.
        return _swish_ref(x)
    bulk_out = _swish_flat_aligned(x_flat[:n_bulk])
    tail_out = _swish_ref(x_flat[n_bulk:])
    return jnp.concatenate([bulk_out, tail_out]).reshape(orig_shape)


if __name__ == "__main__":
    key = jax.random.PRNGKey(0)
    k0, k1, k2, k3 = jax.random.split(key, 4)

    # NCHW conv-activation shape; aligned fast path (numel = 2048).
    x = jax.random.normal(k0, (2, 4, 16, 16), dtype=jnp.float32)
    y = jax.block_until_ready(swish(x))
    assert y.shape == x.shape and y.dtype == x.dtype
    assert jnp.allclose(y, _swish_ref(x), atol=1e-5, rtol=1e-5)

    # Ragged shape with a 128-aligned bulk + small tail: exercises the
    # cdiv/masked-edge-block grid and the XLA tail path.
    x2 = jax.random.normal(k1, (5, 300), dtype=jnp.float32)
    y2 = jax.block_until_ready(swish(x2))
    assert y2.shape == x2.shape and y2.dtype == x2.dtype
    assert jnp.allclose(y2, _swish_ref(x2), atol=1e-5, rtol=1e-5)

    # Tiny ragged tensor (pure XLA path).
    x3 = jax.random.normal(k2, (3, 5, 7), dtype=jnp.float32)
    y3 = jax.block_until_ready(swish(x3))
    assert y3.shape == x3.shape and y3.dtype == x3.dtype
    assert jnp.allclose(y3, _swish_ref(x3), atol=1e-5, rtol=1e-5)

    # bf16 input: compute happens in f32 inside the kernel, cast on store.
    x4 = jax.random.normal(k3, (4, 256), dtype=jnp.bfloat16)
    y4 = jax.block_until_ready(swish(x4))
    ref4 = _swish_ref(x4.astype(jnp.float32)).astype(jnp.bfloat16)
    assert y4.shape == x4.shape and y4.dtype == jnp.bfloat16
    assert jnp.allclose(y4.astype(jnp.float32), ref4.astype(jnp.float32),
                        atol=1e-2, rtol=1e-2)

    print("KERNEL_OK")
</pallas_src>

<mosaic_0001>
module attributes {stable_mosaic.version = 11 : i64} {
  func.func @_swish_kernel(%arg0: i32, %arg1: memref<2x1024xf32, #tpu.memory_space<vmem>>, %arg2: memref<2x1024xf32, #tpu.memory_space<vmem>>) attributes {dimension_semantics = [#tpu.dimension_semantics<parallel>], iteration_bounds = array<i64: 1>, scalar_prefetch = 0 : i64, scratch_operands = 0 : i64, tpu.core_type = #tpu.core_type<tc>, window_params = [{transform_indices = @transform_0, window_bounds = array<i64: 2, 1024>}, {transform_indices = @transform_1, window_bounds = array<i64: 2, 1024>}]} {
    %c0 = arith.constant 0 : index
    %c0_0 = arith.constant 0 : index
    %0 = vector.load %arg1[%c0, %c0_0] : memref<2x1024xf32, #tpu.memory_space<vmem>>, vector<2x1024xf32>
    %cst = arith.constant 5.000000e-01 : f32
    %1 = vector.broadcast %cst : f32 to vector<2x1024xf32>
    %2 = arith.mulf %1, %0 : vector<2x1024xf32>
    %3 = math.tanh %2 : vector<2x1024xf32>
    %cst_1 = arith.constant 1.000000e+00 : f32
    %4 = vector.broadcast %cst_1 : f32 to vector<2x1024xf32>
    %5 = arith.addf %3, %4 : vector<2x1024xf32>
    %cst_2 = arith.constant 5.000000e-01 : f32
    %6 = vector.broadcast %cst_2 : f32 to vector<2x1024xf32>
    %7 = arith.mulf %6, %5 : vector<2x1024xf32>
    %8 = arith.mulf %0, %7 : vector<2x1024xf32>
    %c0_3 = arith.constant 0 : index
    %c0_4 = arith.constant 0 : index
    %9 = vector.load %arg2[%c0_3, %c0_4] : memref<2x1024xf32, #tpu.memory_space<vmem>>, vector<2x1024xf32>
    tpu.vector_store %arg2[%c0_3, %c0_4], %8 {strides = array<i32>} : memref<2x1024xf32, #tpu.memory_space<vmem>>, vector<2x1024xf32>,
    return
  }
  func.func @transform_0(%arg0: i32) -> (i32, i32) {
    %c0_i32 = arith.constant 0 : i32
    %c0_i32_0 = arith.constant 0 : i32
    return %arg0, %c0_i32 : i32, i32
  }
  func.func @transform_1(%arg0: i32) -> (i32, i32) {
    %c0_i32 = arith.constant 0 : i32
    %c0_i32_0 = arith.constant 0 : i32
    return %arg0, %c0_i32 : i32, i32
  }
}

</mosaic_0001>

<llo_original>
// kernel: tpu_custom_call.1
$region0: #{tpu_custom_call.1}
  #allocation0 [shape = 'u32[]', space=smem, size = 0x4, offset = 0x4, fixed_abs, tag = 'smem constant byte address 0x4 - core index']
  #allocation1 [shape = 'u32[144,128]{1,0:T(1,128)}', space=vmem, size = 0x12000, scoped, tag = 'internal scratch']
  %s0 = inlined_call_operand.hbm [shape: f32[2,1024], index: 0, kind: input, shape index: {}]
  %s1 = inlined_call_operand.hbm [shape: f32[2,1024], index: 1, kind: output, shape index: {}]
  %s2 = sld [smem:[#allocation0]]
  $region18: #{tpu_custom_call.1} parent=0
    _
  %s4 = ssub.s32 1, %s2
  %s5 = scalar_select 0, %s4, %s2
  $region1: #{tpu_custom_call.1} parent=0
    #allocation2 [shape = 'u8[8192]{0}', space=vmem, size = 0x2000, scoped, tag = 'input window, operand 0, single buffered']
    #allocation3 [shape = 's32[1]{0}', space=sflag, size = 0x4, scoped, tag = 'scoped memory for tpu_custom_call.1']
    #allocation4 [shape = 's32[1]{0}', space=sflag, size = 0x4, scoped, tag = 'scoped memory for tpu_custom_call.1']
    #allocation5 [shape = 'u8[8192]{0}', space=vmem, size = 0x2000, scoped, tag = 'output window, operand 0, single buffered']
    %6 = vsyncpa [#allocation3], 0
    %7 = vsyncpa [#allocation4], 0
    // Predicated region
    $region2: #{tpu_custom_call.1} parent=1 // pred_check
      _
    $region3: #{tpu_custom_call.1} parent=1 // pred_check_branch
      %9 = sbr.rel (0) target = $region5
    $region4: #{tpu_custom_call.1} parent=1 // pred_region
      %s11 = ssub.s32 256, 256
      %12 = vsyncadd [#allocation3], %s11
      %s14 = sshll.u32 [#allocation2], 4
      %s15 = int_to_ptr.vmem [resolvable:$true] %s14
      %17 = dma.hbm_to_vmem [thread:$0]  %s0, 256, %s15, [#allocation3]
    $region5: #{tpu_custom_call.1} parent=1 // pred_fallthru
      _
    // Predicated region
    $region6: #{tpu_custom_call.1} parent=1 // pred_check
      _
    $region7: #{tpu_custom_call.1} parent=1 // pred_check_branch
      %19 = sbr.rel (0) target = $region9
    $region8: #{tpu_custom_call.1} parent=1 // pred_region
      %20 = dma.done [#allocation3], 256
    $region9: #{tpu_custom_call.1} parent=1 // pred_fallthru
      _
    %v21 = vld [vmem:[#allocation2] sm:$0xff]
    %v22 = vld [vmem:[#allocation2 + $0x8] sm:$0xff]
    %v23 = vmul.f32 %v21, 0.5
    %v24 = vmul.f32 %v22, 0.5
    %v25 = vtanh.pop %v23
    %v26 = vtanh.pop %v24
    %v27 = vadd.f32 %v25, 1.0
    %v28 = vadd.f32 %v26, 1.0
    %v29 = vmul.f32 %v27, 0.5
    %v30 = vmul.f32 %v28, 0.5
    %v31 = vmul.f32 %v21, %v29
    %v32 = vmul.f32 %v22, %v30
    %33 = vst [vmem:[#allocation5] sm:$0xff] %v31
    %34 = vst [vmem:[#allocation5 + $0x8] sm:$0xff] %v32
    // Predicated region
    $region10: #{tpu_custom_call.1} parent=1 // pred_check
      _
    $region11: #{tpu_custom_call.1} parent=1 // pred_check_branch
      %36 = sbr.rel (0) target = $region13
    $region12: #{tpu_custom_call.1} parent=1 // pred_region
      %s38 = ssub.s32 256, 256
      %39 = vsyncadd [#allocation4], %s38
      %s41 = sshll.u32 [#allocation5], 4
      %s42 = int_to_ptr.vmem [resolvable:$true] %s41
      %44 = dma.vmem_to_hbm [thread:$0]  %s42, 256, %s1, [#allocation4]
    $region13: #{tpu_custom_call.1} parent=1 // pred_fallthru
      _
    // Predicated region
    $region14: #{tpu_custom_call.1} parent=1 // pred_check
      _
    $region15: #{tpu_custom_call.1} parent=1 // pred_check_branch
      %46 = sbr.rel (0) target = $region17
    $region16: #{tpu_custom_call.1} parent=1 // pred_region
      %47 = dma.done [#allocation4], 256
    $region17: #{tpu_custom_call.1} parent=1 // pred_fallthru
      _
    %48 = vsyncpa [#allocation3], 1
    %49 = vsyncpa [#allocation4], 1

</llo_original>
